<compile_context>
chip_gen: v7x
topology: tpu7x:2x2x1
jax: 0.10.0
libtpu: 0.0.40
codegen_flags: <defaults>
</compile_context>

<pallas_src>
import functools

import jax
import jax.numpy as jnp
from jax.experimental import pallas as pl
from jax.experimental.pallas import tpu as pltpu

LEAKY_SLOPE = 0.01  # torch.nn.LeakyReLU default negative_slope


def _round_up(x, m):
    return (x + m - 1) // m * m


def _device_kind():
    try:
        return jax.devices()[0].device_kind.lower()
    except Exception:
        return ""


def _activation_dtype():
    # bf16 VALU exists on v6e/v7x; on v5e (and older) bf16 elementwise lowers
    # to unpack/f32/repack, so keep the activation path in f32 there.
    kind = _device_kind()
    if ("v6" in kind) or ("v7" in kind):
        return jnp.bfloat16
    return jnp.float32


def _min_grid_steps():
    # v7x has 2 TensorCores per chip: make sure the "parallel" batch axis has
    # at least (an even number of) 2 grid steps so both TCs get work.
    return 2 if "v7" in _device_kind() else 1


def _vmem_capacity_bytes():
    try:
        return int(pltpu.get_tpu_info().vmem_capacity_bytes)
    except Exception:
        return 64 * 1024 * 1024  # conservative (v7x-sized) fallback


def _max_batch_tile(p_in, p_hidden, weight_bytes, vmem_limit):
    """Upper bound on the batch tile from the per-row VMEM footprint."""
    # f32 dot results + bf16/f32 activations at each hidden width
    # + double-buffered bf16 x block + double-buffered f32 out row.
    per_row = (4 * sum(p_hidden) + 2 * sum(p_hidden) + 2 * 2 * p_in + 2 * 4)
    # Pallas double-buffers every input, including the "resident" weights,
    # so reserve 2x their bytes up front (cheaper/safer than pl.Buffered(1)).
    budget = max(vmem_limit - 2 * weight_bytes, 4 * 1024 * 1024) // 2
    tb = budget // max(per_row, 1)
    return int(max(128, min(tb, 2048)))


def mlp_kernel(x_ref,
               w1_ref, b1_ref,
               w2_ref, b2_ref,
               w3_ref, b3_ref,
               w4_ref, b4_ref,
               o_ref,
               *, y_lo, y_hi, act_dtype, matmul_dtype):
    slope = jnp.asarray(LEAKY_SLOPE, dtype=act_dtype)

    def layer(h_in, w_ref, b_ref):
        # MXU matmul with f32 accumulation.
        h = jnp.dot(h_in, w_ref[...], preferred_element_type=jnp.float32)
        # Bias + LeakyReLU in act_dtype (bf16 on v6e/v7x, f32 on v5e).
        h = h.astype(act_dtype) + b_ref[...]
        # LeakyReLU: max(h, slope*h) == where(h>=0, h, slope*h) for 0<slope<1
        # (mul+max = 2 VALU ops/elem vs cmp+mul+select = 3).
        h = jnp.maximum(h, slope * h)
        return h.astype(matmul_dtype)

    h = layer(x_ref[...], w1_ref, b1_ref)   # Linear -> LeakyReLU (-> Dropout=id)
    h = layer(h, w2_ref, b2_ref)
    h = layer(h, w3_ref, b3_ref)

    # Final Linear(., 1) on the MXU with a lane-dense result:
    # w4 is stored padded to (8, H3p) (rows 1..7 zero); contracting the last
    # dims of (8, H3p) x (tb, H3p) (q.k^T style) gives (8, tb); keep row 0.
    z = jax.lax.dot_general(w4_ref[...], h, (((1,), (1,)), ((), ())),
                            preferred_element_type=jnp.float32)
    z = z[0:1, :] + b4_ref[...]                                   # (1, tb) f32

    # y-range squashing in f32: (hi - lo) * sigmoid(z) + lo ; lane-dense store.
    o_ref[...] = ((y_hi - y_lo) * jax.nn.sigmoid(z) + y_lo).astype(o_ref.dtype)


def make_params(key, in_features, layers):
    """Deterministic PyTorch-Linear-style init: U(-1/sqrt(fan_in), 1/sqrt(fan_in))."""
    dims = [in_features] + list(layers) + [1]
    params = []
    for fi, fo in zip(dims[:-1], dims[1:]):
        key, kw, kb = jax.random.split(key, 3)
        bound = 1.0 / (fi ** 0.5)
        # stored as [in, out] so the kernel does x @ W
        w = jax.random.uniform(kw, (fi, fo), jnp.float32, -bound, bound)
        b = jax.random.uniform(kb, (1, fo), jnp.float32, -bound, bound)
        params.append((w, b))
    return params


def nn_forward(x, params, y_range=(20.0, 90.0), *, block_batch=None,
               weights_dtype=jnp.bfloat16):
    assert len(params) == 4, "NN = 3 hidden Linear layers + final Linear(.,1)"
    (w1, b1), (w2, b2), (w3, b3), (w4, b4) = params
    batch, in_features = x.shape
    h1, h2, h3 = w1.shape[1], w2.shape[1], w3.shape[1]

    act_dtype = _activation_dtype()

    # Lane-pad feature dims to multiples of 128 (exact: padded rows/cols are
    # zero, LeakyReLU(0) == 0, so padded lanes never contribute).
    p_in = _round_up(in_features, 128)
    p_h = [_round_up(h, 128) for h in (h1, h2, h3)]

    def pad2(a, r, c):
        return jnp.pad(a, ((0, r - a.shape[0]), (0, c - a.shape[1])))

    w1p = pad2(w1, p_in, p_h[0]).astype(weights_dtype)
    b1p = pad2(b1, 1, p_h[0]).astype(act_dtype)
    w2p = pad2(w2, p_h[0], p_h[1]).astype(weights_dtype)
    b2p = pad2(b2, 1, p_h[1]).astype(act_dtype)
    w3p = pad2(w3, p_h[1], p_h[2]).astype(weights_dtype)
    b3p = pad2(b3, 1, p_h[2]).astype(act_dtype)
    # Final layer weight as an (8, H3p) block (rows 1..7 zero) for the MXU.
    w4p = pad2(w4.T, 8, p_h[2]).astype(weights_dtype)
    b4p = b4.reshape(1, 1).astype(jnp.float32)

    resident = (w1p, b1p, w2p, b2p, w3p, b3p, w4p, b4p)
    weight_bytes = sum(int(a.size) * a.dtype.itemsize for a in resident)

    # Chip-aware VMEM budget (v7x: 64 MiB, v5e/v6e: 128 MiB).
    vmem_cap = _vmem_capacity_bytes()
    vmem_limit = min(vmem_cap * 3 // 4, 96 * 1024 * 1024)

    min_steps = _min_grid_steps()
    if block_batch is not None:
        tb = max(16, _round_up(int(block_batch), 16))
    else:
        tb_max = _max_batch_tile(p_in, p_h, weight_bytes, vmem_limit)
        steps0 = max(min_steps, pl.cdiv(batch, tb_max))
        if min_steps == 2:
            steps0 = _round_up(steps0, 2)     # balance v7x's 2 TensorCores
        tb = pl.cdiv(batch, steps0)
        # bf16 x / activations want 16-row sublane multiples; keep the tile a
        # multiple of 128 when large so the lane-dense output row fills vregs.
        tb = _round_up(tb, 128 if tb >= 128 else 16)
    steps = max(min_steps, pl.cdiv(batch, tb))
    if min_steps == 2:
        steps = _round_up(steps, 2)
    batch_padded = steps * tb
    grid = (steps,)

    xp = jnp.pad(x.astype(weights_dtype),
                 ((0, batch_padded - batch), (0, p_in - in_features)))

    def const_spec(shape):
        return pl.BlockSpec(shape, lambda i: (0, 0))   # resident across grid

    in_specs = [pl.BlockSpec((tb, p_in), lambda i: (i, 0))] + \
               [const_spec(a.shape) for a in resident]
    # Lane-dense output: one (1, tb) row per grid step.
    out_spec = pl.BlockSpec((1, tb), lambda i: (i, 0))

    flops = 2 * batch_padded * (p_in * p_h[0] + p_h[0] * p_h[1]
                                + p_h[1] * p_h[2] + 8 * p_h[2])
    cost = pl.CostEstimate(
        flops=int(flops),
        transcendentals=int(2 * batch_padded),          # sigmoid = exp + recip
        bytes_accessed=int(xp.size * xp.dtype.itemsize
                           + weight_bytes + batch_padded * 4),
    )

    kernel = functools.partial(mlp_kernel,
                               y_lo=float(y_range[0]),
                               y_hi=float(y_range[1]),
                               act_dtype=act_dtype,
                               matmul_dtype=weights_dtype)

    out = pl.pallas_call(
        kernel,
        out_shape=jax.ShapeDtypeStruct((steps, tb), jnp.float32),
        grid=grid,
        in_specs=in_specs,
        out_specs=out_spec,
        compiler_params=pltpu.CompilerParams(
            dimension_semantics=("parallel",),
            vmem_limit_bytes=int(vmem_limit),
        ),
        cost_estimate=cost,
    )(xp, *resident)

    # (steps, tb) rows are exactly batch rows [i*tb, (i+1)*tb) in order.
    return out.reshape(batch_padded, 1)[:batch]


def nn_forward_ref(x, params, y_range=(20.0, 90.0), *, act_dtype=None,
                   weights_dtype=jnp.bfloat16):
    """Pure-JAX reference mirroring the kernel's dtype strategy
    (bf16 matmul operands, f32 accumulation, act_dtype bias/LeakyReLU)."""
    if act_dtype is None:
        act_dtype = _activation_dtype()
    (w1, b1), (w2, b2), (w3, b3), (w4, b4) = params
    slope = jnp.asarray(LEAKY_SLOPE, dtype=act_dtype)

    def layer(h_in, w, b):
        h = jnp.dot(h_in, w.astype(weights_dtype),
                    preferred_element_type=jnp.float32)
        h = h.astype(act_dtype) + b.astype(act_dtype)
        h = jnp.maximum(h, slope * h)
        return h.astype(weights_dtype)

    h = layer(x.astype(weights_dtype), w1, b1)
    h = layer(h, w2, b2)
    h = layer(h, w3, b3)
    w4_row = w4.T.astype(weights_dtype)                         # (1, H3)
    z = jax.lax.dot_general(w4_row, h, (((1,), (1,)), ((), ())),
                            preferred_element_type=jnp.float32)  # (1, batch)
    z = z.T + b4.reshape(1, 1)                                   # (batch, 1)
    return (y_range[1] - y_range[0]) * jax.nn.sigmoid(z) + y_range[0]


if __name__ == "__main__":
    # Small shapes consistent with the module: in_features=20, 3 hidden layers
    # (scaled-down versions of [1000, 500, 250]).
    in_features = 20
    layers = [128, 64, 32]
    batch = 64
    y_range = (20.0, 90.0)

    key = jax.random.PRNGKey(0)
    key, kx = jax.random.split(key)
    x = jax.random.normal(kx, (batch, in_features), jnp.float32)
    params = make_params(key, in_features, layers)

    out = nn_forward(x, params, y_range)
    out = jax.block_until_ready(out)

    ref = nn_forward_ref(x, params, y_range)
    assert out.shape == (batch, 1)
    max_diff = float(jnp.max(jnp.abs(out - ref)))
    assert jnp.allclose(out, ref, atol=5e-2, rtol=1e-3), max_diff

    print("KERNEL_OK")
</pallas_src>

<mosaic_0001>
module attributes {stable_mosaic.version = 11 : i64} {
  func.func @mlp_kernel(%arg0: i32, %arg1: memref<64x128xbf16, #tpu.memory_space<vmem>>, %arg2: memref<128x128xbf16, #tpu.memory_space<vmem>>, %arg3: memref<1x128xf32, #tpu.memory_space<vmem>>, %arg4: memref<128x128xbf16, #tpu.memory_space<vmem>>, %arg5: memref<1x128xf32, #tpu.memory_space<vmem>>, %arg6: memref<128x128xbf16, #tpu.memory_space<vmem>>, %arg7: memref<1x128xf32, #tpu.memory_space<vmem>>, %arg8: memref<8x128xbf16, #tpu.memory_space<vmem>>, %arg9: memref<1x1xf32, #tpu.memory_space<vmem>>, %arg10: memref<1x64xf32, #tpu.memory_space<vmem>>) attributes {dimension_semantics = [#tpu.dimension_semantics<parallel>], iteration_bounds = array<i64: 1>, scalar_prefetch = 0 : i64, scratch_operands = 0 : i64, tpu.core_type = #tpu.core_type<tc>, window_params = [{transform_indices = @transform_0, window_bounds = array<i64: 64, 128>}, {pipeline_mode = #tpu.pipeline_mode<synchronous>, transform_indices = @transform_1, window_bounds = array<i64: 128, 128>}, {pipeline_mode = #tpu.pipeline_mode<synchronous>, transform_indices = @transform_2, window_bounds = array<i64: 1, 128>}, {pipeline_mode = #tpu.pipeline_mode<synchronous>, transform_indices = @transform_3, window_bounds = array<i64: 128, 128>}, {pipeline_mode = #tpu.pipeline_mode<synchronous>, transform_indices = @transform_4, window_bounds = array<i64: 1, 128>}, {pipeline_mode = #tpu.pipeline_mode<synchronous>, transform_indices = @transform_5, window_bounds = array<i64: 128, 128>}, {pipeline_mode = #tpu.pipeline_mode<synchronous>, transform_indices = @transform_6, window_bounds = array<i64: 1, 128>}, {pipeline_mode = #tpu.pipeline_mode<synchronous>, transform_indices = @transform_7, window_bounds = array<i64: 8, 128>}, {pipeline_mode = #tpu.pipeline_mode<synchronous>, transform_indices = @transform_8, window_bounds = array<i64: 1, 1>}, {transform_indices = @transform_9, window_bounds = array<i64: 1, 64>}]} {
    %c0 = arith.constant 0 : index
    %c0_0 = arith.constant 0 : index
    %0 = vector.load %arg1[%c0, %c0_0] : memref<64x128xbf16, #tpu.memory_space<vmem>>, vector<64x128xbf16>
    %c0_1 = arith.constant 0 : index
    %c0_2 = arith.constant 0 : index
    %1 = vector.load %arg2[%c0_1, %c0_2] : memref<128x128xbf16, #tpu.memory_space<vmem>>, vector<128x128xbf16>
    %cst = arith.constant dense<0.000000e+00> : vector<64x128xf32>
    %2 = tpu.matmul %0, %1, %cst {dimension_numbers = #tpu.dot_dimension_numbers<[1], [0], [0], [1], [0, 0, 1, 1], [], []>} : vector<64x128xbf16>, vector<128x128xbf16>, vector<64x128xf32> -> vector<64x128xf32>
    %c0_3 = arith.constant 0 : index
    %c0_4 = arith.constant 0 : index
    %3 = vector.load %arg3[%c0_3, %c0_4] : memref<1x128xf32, #tpu.memory_space<vmem>>, vector<1x128xf32>
    %4 = vector.broadcast %3 : vector<1x128xf32> to vector<64x128xf32>
    %5 = arith.addf %2, %4 : vector<64x128xf32>
    %cst_5 = arith.constant 0.00999999977 : f32
    %6 = vector.broadcast %cst_5 : f32 to vector<64x128xf32>
    %7 = arith.mulf %6, %5 : vector<64x128xf32>
    %8 = arith.maximumf %5, %7 : vector<64x128xf32>
    %9 = arith.truncf %8 : vector<64x128xf32> to vector<64x128xbf16>
    %c0_6 = arith.constant 0 : index
    %c0_7 = arith.constant 0 : index
    %10 = vector.load %arg4[%c0_6, %c0_7] : memref<128x128xbf16, #tpu.memory_space<vmem>>, vector<128x128xbf16>
    %cst_8 = arith.constant dense<0.000000e+00> : vector<64x128xf32>
    %11 = tpu.matmul %9, %10, %cst_8 {dimension_numbers = #tpu.dot_dimension_numbers<[1], [0], [0], [1], [0, 0, 1, 1], [], []>} : vector<64x128xbf16>, vector<128x128xbf16>, vector<64x128xf32> -> vector<64x128xf32>
    %c0_9 = arith.constant 0 : index
    %c0_10 = arith.constant 0 : index
    %12 = vector.load %arg5[%c0_9, %c0_10] : memref<1x128xf32, #tpu.memory_space<vmem>>, vector<1x128xf32>
    %13 = vector.broadcast %12 : vector<1x128xf32> to vector<64x128xf32>
    %14 = arith.addf %11, %13 : vector<64x128xf32>
    %cst_11 = arith.constant 0.00999999977 : f32
    %15 = vector.broadcast %cst_11 : f32 to vector<64x128xf32>
    %16 = arith.mulf %15, %14 : vector<64x128xf32>
    %17 = arith.maximumf %14, %16 : vector<64x128xf32>
    %18 = arith.truncf %17 : vector<64x128xf32> to vector<64x128xbf16>
    %c0_12 = arith.constant 0 : index
    %c0_13 = arith.constant 0 : index
    %19 = vector.load %arg6[%c0_12, %c0_13] : memref<128x128xbf16, #tpu.memory_space<vmem>>, vector<128x128xbf16>
    %cst_14 = arith.constant dense<0.000000e+00> : vector<64x128xf32>
    %20 = tpu.matmul %18, %19, %cst_14 {dimension_numbers = #tpu.dot_dimension_numbers<[1], [0], [0], [1], [0, 0, 1, 1], [], []>} : vector<64x128xbf16>, vector<128x128xbf16>, vector<64x128xf32> -> vector<64x128xf32>
    %c0_15 = arith.constant 0 : index
    %c0_16 = arith.constant 0 : index
    %21 = vector.load %arg7[%c0_15, %c0_16] : memref<1x128xf32, #tpu.memory_space<vmem>>, vector<1x128xf32>
    %22 = vector.broadcast %21 : vector<1x128xf32> to vector<64x128xf32>
    %23 = arith.addf %20, %22 : vector<64x128xf32>
    %cst_17 = arith.constant 0.00999999977 : f32
    %24 = vector.broadcast %cst_17 : f32 to vector<64x128xf32>
    %25 = arith.mulf %24, %23 : vector<64x128xf32>
    %26 = arith.maximumf %23, %25 : vector<64x128xf32>
    %27 = arith.truncf %26 : vector<64x128xf32> to vector<64x128xbf16>
    %c0_18 = arith.constant 0 : index
    %c0_19 = arith.constant 0 : index
    %28 = vector.load %arg8[%c0_18, %c0_19] : memref<8x128xbf16, #tpu.memory_space<vmem>>, vector<8x128xbf16>
    %cst_20 = arith.constant dense<0.000000e+00> : vector<8x64xf32>
    %29 = tpu.matmul %28, %27, %cst_20 {dimension_numbers = #tpu.dot_dimension_numbers<[1], [1], [0], [0], [0, 0, 1, 0], [], []>} : vector<8x128xbf16>, vector<64x128xbf16>, vector<8x64xf32> -> vector<8x64xf32>
    %30 = vector.extract_strided_slice %29 {offsets = [0, 0], sizes = [1, 64], strides = [1, 1]} : vector<8x64xf32> to vector<1x64xf32>
    %c0_21 = arith.constant 0 : index
    %c0_22 = arith.constant 0 : index
    %31 = vector.load %arg9[%c0_21, %c0_22] : memref<1x1xf32, #tpu.memory_space<vmem>>, vector<1x1xf32>
    %32 = vector.broadcast %31 : vector<1x1xf32> to vector<1x64xf32>
    %33 = arith.addf %30, %32 : vector<1x64xf32>
    %34 = arith.negf %33 : vector<1x64xf32>
    %35 = math.exp %34 : vector<1x64xf32>
    %cst_23 = arith.constant 1.000000e+00 : f32
    %36 = vector.broadcast %cst_23 : f32 to vector<1x64xf32>
    %37 = arith.addf %36, %35 : vector<1x64xf32>
    %38 = arith.divf %36, %37 : vector<1x64xf32>
    %cst_24 = arith.constant 7.000000e+01 : f32
    %39 = vector.broadcast %cst_24 : f32 to vector<1x64xf32>
    %40 = arith.mulf %39, %38 : vector<1x64xf32>
    %cst_25 = arith.constant 2.000000e+01 : f32
    %41 = vector.broadcast %cst_25 : f32 to vector<1x64xf32>
    %42 = arith.addf %40, %41 : vector<1x64xf32>
    %c0_26 = arith.constant 0 : index
    %c0_27 = arith.constant 0 : index
    %43 = vector.load %arg10[%c0_26, %c0_27] : memref<1x64xf32, #tpu.memory_space<vmem>>, vector<1x64xf32>
    tpu.vector_store %arg10[%c0_26, %c0_27], %42 {strides = array<i32>} : memref<1x64xf32, #tpu.memory_space<vmem>>, vector<1x64xf32>,
    return
  }
  func.func @transform_0(%arg0: i32) -> (i32, i32) {
    %c0_i32 = arith.constant 0 : i32
    %c0_i32_0 = arith.constant 0 : i32
    return %arg0, %c0_i32 : i32, i32
  }
  func.func @transform_1(%arg0: i32) -> (i32, i32) {
    %c0_i32 = arith.constant 0 : i32
    %c0_i32_0 = arith.constant 0 : i32
    %c0_i32_1 = arith.constant 0 : i32
    return %c0_i32, %c0_i32_0 : i32, i32
  }
  func.func @transform_2(%arg0: i32) -> (i32, i32) {
    %c0_i32 = arith.constant 0 : i32
    %c0_i32_0 = arith.constant 0 : i32
    %c0_i32_1 = arith.constant 0 : i32
    return %c0_i32, %c0_i32_0 : i32, i32
  }
  func.func @transform_3(%arg0: i32) -> (i32, i32) {
    %c0_i32 = arith.constant 0 : i32
    %c0_i32_0 = arith.constant 0 : i32
    %c0_i32_1 = arith.constant 0 : i32
    return %c0_i32, %c0_i32_0 : i32, i32
  }
  func.func @transform_4(%arg0: i32) -> (i32, i32) {
    %c0_i32 = arith.constant 0 : i32
    %c0_i32_0 = arith.constant 0 : i32
    %c0_i32_1 = arith.constant 0 : i32
    return %c0_i32, %c0_i32_0 : i32, i32
  }
  func.func @transform_5(%arg0: i32) -> (i32, i32) {
    %c0_i32 = arith.constant 0 : i32
    %c0_i32_0 = arith.constant 0 : i32
    %c0_i32_1 = arith.constant 0 : i32
    return %c0_i32, %c0_i32_0 : i32, i32
  }
  func.func @transform_6(%arg0: i32) -> (i32, i32) {
    %c0_i32 = arith.constant 0 : i32
    %c0_i32_0 = arith.constant 0 : i32
    %c0_i32_1 = arith.constant 0 : i32
    return %c0_i32, %c0_i32_0 : i32, i32
  }
  func.func @transform_7(%arg0: i32) -> (i32, i32) {
    %c0_i32 = arith.constant 0 : i32
    %c0_i32_0 = arith.constant 0 : i32
    %c0_i32_1 = arith.constant 0 : i32
    return %c0_i32, %c0_i32_0 : i32, i32
  }
  func.func @transform_8(%arg0: i32) -> (i32, i32) {
    %c0_i32 = arith.constant 0 : i32
    %c0_i32_0 = arith.constant 0 : i32
    %c0_i32_1 = arith.constant 0 : i32
    return %c0_i32, %c0_i32_0 : i32, i32
  }
  func.func @transform_9(%arg0: i32) -> (i32, i32) {
    %c0_i32 = arith.constant 0 : i32
    %c0_i32_0 = arith.constant 0 : i32
    return %arg0, %c0_i32 : i32, i32
  }
}

</mosaic_0001>

<llo_original>
// kernel: tpu_custom_call.1
$region0: #{tpu_custom_call.1}
  #allocation0 [shape = 'u32[]', space=smem, size = 0x4, offset = 0x4, fixed_abs, tag = 'smem constant byte address 0x4 - core index']
  #allocation1 [shape = 'u32[144,128]{1,0:T(1,128)}', space=vmem, size = 0x12000, scoped, tag = 'internal scratch']
  #allocation2 [shape = 'f32[1,1]{1,0:T(1,128)S(1)}', space=vmem, size = 0x200, scoped, tag = 'scoped memory for tpu_custom_call.1']
  %s0 = inlined_call_operand.hbm [shape: bf16[64,128], index: 0, kind: input, shape index: {}]
  %s1 = inlined_call_operand.hbm [shape: bf16[128,128], index: 1, kind: input, shape index: {}]
  %s2 = inlined_call_operand.vmem [shape: f32[1,128], index: 2, kind: input, shape index: {}]
  %s3 = inlined_call_operand.hbm [shape: bf16[128,128], index: 3, kind: input, shape index: {}]
  %s4 = inlined_call_operand.vmem [shape: f32[1,128], index: 4, kind: input, shape index: {}]
  %s5 = inlined_call_operand.hbm [shape: bf16[128,128], index: 5, kind: input, shape index: {}]
  %s6 = inlined_call_operand.vmem [shape: f32[1,128], index: 6, kind: input, shape index: {}]
  %s7 = inlined_call_operand.vmem [shape: bf16[8,128], index: 7, kind: input, shape index: {}]
  %s8 = inlined_call_operand.<no memory space> [shape: f32[1,1], index: 8, kind: input, shape index: {}]
  %s9 = inlined_call_operand.hbm [shape: f32[1,64], index: 9, kind: output, shape index: {}]
  %s10 = sld [smem:[#allocation0]]
  $region62: #{tpu_custom_call.1} parent=0
    _
  %s12 = ssub.s32 1, %s10
  %s13 = scalar_select 0, %s12, %s10
  %v14 = vstv %s8
  %15 = vst [vmem:[#allocation2] sm:$0x1] %v14
  $region1: #{tpu_custom_call.1} parent=0
    #allocation3 [shape = 'u8[16384]{0}', space=vmem, size = 0x4000, scoped, tag = 'input window, operand 0, single buffered']
    #allocation4 [shape = 's32[1]{0}', space=sflag, size = 0x4, scoped, tag = 'scoped memory for tpu_custom_call.1']
    #allocation5 [shape = 's32[1]{0}', space=sflag, size = 0x4, scoped, tag = 'scoped memory for tpu_custom_call.1']
    #allocation6 [shape = 'u8[32768]{0}', space=vmem, size = 0x8000, scoped, tag = 'input window, operand 1, single buffered']
    #allocation7 [shape = 's32[1]{0}', space=sflag, size = 0x4, scoped, tag = 'scoped memory for tpu_custom_call.1']
    #allocation8 [shape = 'u8[32768]{0}', space=vmem, size = 0x8000, scoped, tag = 'input window, operand 3, single buffered']
    #allocation9 [shape = 'u8[32768]{0}', space=vmem, size = 0x8000, scoped, tag = 'input window, operand 5, single buffered']
    #allocation10 [shape = 's32[1]{0}', space=sflag, size = 0x4, scoped, tag = 'scoped memory for tpu_custom_call.1']
    #allocation11 [shape = 'u8[512]{0}', space=vmem, size = 0x400, scoped, tag = 'output window, operand 0, single buffered']
    %16 = vsyncpa [#allocation4], 0
    %17 = vsyncpa [#allocation7], 0
    %18 = vsyncpa [#allocation10], 0
    %19 = vsyncpa [#allocation5], 0
    // Predicated region
    $region2: #{tpu_custom_call.1} parent=1 // pred_check
      _
    $region3: #{tpu_custom_call.1} parent=1 // pred_check_branch
      %21 = sbr.rel (0) target = $region5
    $region4: #{tpu_custom_call.1} parent=1 // pred_region
      %s23 = ssub.s32 512, 512
      %24 = vsyncadd [#allocation4], %s23
      %s25 = sshll.u32 [#allocation3], 4
      %s26 = int_to_ptr.vmem [resolvable:$true] %s25
      %31 = dma.hbm_to_vmem [thread:$0]  %s0, 512, %s26, [#allocation4], 64, 64, 4
    $region5: #{tpu_custom_call.1} parent=1 // pred_fallthru
      _
    // Predicated region
    $region6: #{tpu_custom_call.1} parent=1 // pred_check
      _
    $region7: #{tpu_custom_call.1} parent=1 // pred_check_branch
      %33 = sbr.rel (0) target = $region9
    $region8: #{tpu_custom_call.1} parent=1 // pred_region
      %s35 = ssub.s32 1024, 1024
      %36 = vsyncadd [#allocation7], %s35
      %s37 = sshll.u32 [#allocation6], 4
      %s38 = int_to_ptr.vmem [resolvable:$true] %s37
      %43 = dma.hbm_to_vmem [thread:$0]  %s1, 1024, %s38, [#allocation7], 64, 64, 4
    $region9: #{tpu_custom_call.1} parent=1 // pred_fallthru
      _
    // Predicated region
    $region10: #{tpu_custom_call.1} parent=1 // pred_check
      _
    $region11: #{tpu_custom_call.1} parent=1 // pred_check_branch
      %45 = sbr.rel (0) target = $region13
    $region12: #{tpu_custom_call.1} parent=1 // pred_region
      _
    $region13: #{tpu_custom_call.1} parent=1 // pred_fallthru
      _
    // Predicated region
    $region14: #{tpu_custom_call.1} parent=1 // pred_check
      _
    $region15: #{tpu_custom_call.1} parent=1 // pred_check_branch
      %47 = sbr.rel (0) target = $region17
    $region16: #{tpu_custom_call.1} parent=1 // pred_region
      %s49 = ssub.s32 1024, 1024
      %50 = vsyncadd [#allocation7], %s49
      %s51 = sshll.u32 [#allocation8], 4
      %s52 = int_to_ptr.vmem [resolvable:$true] %s51
      %57 = dma.hbm_to_vmem [thread:$0]  %s3, 1024, %s52, [#allocation7], 64, 64, 4
    $region17: #{tpu_custom_call.1} parent=1 // pred_fallthru
      _
    // Predicated region
    $region18: #{tpu_custom_call.1} parent=1 // pred_check
      _
    $region19: #{tpu_custom_call.1} parent=1 // pred_check_branch
      %59 = sbr.rel (0) target = $region21
    $region20: #{tpu_custom_call.1} parent=1 // pred_region
      _
    $region21: #{tpu_custom_call.1} parent=1 // pred_fallthru
      _
    // Predicated region
    $region22: #{tpu_custom_call.1} parent=1 // pred_check
      _
    $region23: #{tpu_custom_call.1} parent=1 // pred_check_branch
      %61 = sbr.rel (0) target = $region25
    $region24: #{tpu_custom_call.1} parent=1 // pred_region
      %s63 = ssub.s32 1024, 1024
      %64 = vsyncadd [#allocation10], %s63
      %s65 = sshll.u32 [#allocation9], 4
      %s66 = int_to_ptr.vmem [resolvable:$true] %s65
      %71 = dma.hbm_to_vmem [thread:$0]  %s5, 1024, %s66, [#allocation10], 64, 64, 4
    $region25: #{tpu_custom_call.1} parent=1 // pred_fallthru
      _
    // Predicated region
    $region26: #{tpu_custom_call.1} parent=1 // pred_check
      _
    $region27: #{tpu_custom_call.1} parent=1 // pred_check_branch
      %73 = sbr.rel (0) target = $region29
    $region28: #{tpu_custom_call.1} parent=1 // pred_region
      _
    $region29: #{tpu_custom_call.1} parent=1 // pred_fallthru
      _
    // Predicated region
    $region30: #{tpu_custom_call.1} parent=1 // pred_check
      _
    $region31: #{tpu_custom_call.1} parent=1 // pred_check_branch
      %75 = sbr.rel (0) target = $region33
    $region32: #{tpu_custom_call.1} parent=1 // pred_region
      _
    $region33: #{tpu_custom_call.1} parent=1 // pred_fallthru
      _
    // Predicated region
    $region34: #{tpu_custom_call.1} parent=1 // pred_check
      _
    $region35: #{tpu_custom_call.1} parent=1 // pred_check_branch
      %77 = sbr.rel (0) target = $region37
    $region36: #{tpu_custom_call.1} parent=1 // pred_region
      _
    $region37: #{tpu_custom_call.1} parent=1 // pred_fallthru
      _
    // Predicated region
    $region38: #{tpu_custom_call.1} parent=1 // pred_check
      _
    $region39: #{tpu_custom_call.1} parent=1 // pred_check_branch
      %79 = sbr.rel (0) target = $region41
    $region40: #{tpu_custom_call.1} parent=1 // pred_region
      %80 = dma.done [#allocation4], 512
    $region41: #{tpu_custom_call.1} parent=1 // pred_fallthru
      _
    // Predicated region
    $region42: #{tpu_custom_call.1} parent=1 // pred_check
      _
    $region43: #{tpu_custom_call.1} parent=1 // pred_check_branch
      %82 = sbr.rel (0) target = $region45
    $region44: #{tpu_custom_call.1} parent=1 // pred_region
      %83 = dma.done [#allocation7], 1024
    $region45: #{tpu_custom_call.1} parent=1 // pred_fallthru
      _
    // Predicated region
    $region46: #{tpu_custom_call.1} parent=1 // pred_check
      _
    $region47: #{tpu_custom_call.1} parent=1 // pred_check_branch
      %85 = sbr.rel (0) target = $region49
    $region48: #{tpu_custom_call.1} parent=1 // pred_region
      %86 = dma.done [#allocation7], 1024
    $region49: #{tpu_custom_call.1} parent=1 // pred_fallthru
      _
    // Predicated region
    $region50: #{tpu_custom_call.1} parent=1 // pred_check
      _
    $region51: #{tpu_custom_call.1} parent=1 // pred_check_branch
      %88 = sbr.rel (0) target = $region53
    $region52: #{tpu_custom_call.1} parent=1 // pred_region
      %89 = dma.done [#allocation10], 1024
    $region53: #{tpu_custom_call.1} parent=1 // pred_fallthru
      _
    %v91 = vld [vmem:[#allocation3] sm:$0xf]
    %v92 = vld [vmem:[#allocation3 + $0x4] sm:$0xf]
    %v93 = vld [vmem:[#allocation3 + $0x8] sm:$0xf]
    %v94 = vld [vmem:[#allocation3 + $0xc] sm:$0xf]
    %v95 = vld [vmem:[#allocation3 + $0x10] sm:$0xf]
    %v96 = vld [vmem:[#allocation3 + $0x14] sm:$0xf]
    %v97 = vld [vmem:[#allocation3 + $0x18] sm:$0xf]
    %v98 = vld [vmem:[#allocation3 + $0x1c] sm:$0xf]
    %v99 = vld [vmem:[#allocation6] sm:$0xf]
    %v100 = vld [vmem:[#allocation6 + $0x4] sm:$0xf]
    %v101 = vld [vmem:[#allocation6 + $0x8] sm:$0xf]
    %v102 = vld [vmem:[#allocation6 + $0xc] sm:$0xf]
    %v103 = vld [vmem:[#allocation6 + $0x10] sm:$0xf]
    %v104 = vld [vmem:[#allocation6 + $0x14] sm:$0xf]
    %v105 = vld [vmem:[#allocation6 + $0x18] sm:$0xf]
    %v106 = vld [vmem:[#allocation6 + $0x1c] sm:$0xf]
    %v107 = vld [vmem:[#allocation6 + $0x20] sm:$0xf]
    %v108 = vld [vmem:[#allocation6 + $0x24] sm:$0xf]
    %v109 = vld [vmem:[#allocation6 + $0x28] sm:$0xf]
    %v110 = vld [vmem:[#allocation6 + $0x2c] sm:$0xf]
    %v111 = vld [vmem:[#allocation6 + $0x30] sm:$0xf]
    %v112 = vld [vmem:[#allocation6 + $0x34] sm:$0xf]
    %v113 = vld [vmem:[#allocation6 + $0x38] sm:$0xf]
    %v114 = vld [vmem:[#allocation6 + $0x3c] sm:$0xf]
    %v115 = vld [vmem:[%s2] sm:$0x1]
    %v117 = vlaneseq
    %v118 = vshrl.u32 %v117, 7
    %v119 = vsub.s32 0, %v118
    %v120 = vrot.slane %v115, %v119
    %v130 = vunpack.c.l.b16 %v91
    %v131 = vunpack.c.l.b16 %v92
    %v132 = vunpack.c.l.b16 %v93
    %v133 = vunpack.c.l.b16 %v94
    %v134 = vunpack.c.l.b16 %v95
    %v135 = vunpack.c.l.b16 %v96
    %v136 = vunpack.c.l.b16 %v97
    %v137 = vunpack.c.l.b16 %v98
    %v138 = vpack.c.b16 %v131, %v130
    %v139 = vpack.c.b16 %v133, %v132
    %v140 = vpack.c.b16 %v135, %v134
    %v141 = vpack.c.b16 %v137, %v136
    %v162 = vunpack.c.l.b16 %v99
    %v163 = vunpack.c.l.b16 %v100
    %v164 = vunpack.c.l.b16 %v101
    %v165 = vunpack.c.l.b16 %v102
    %v166 = vunpack.c.l.b16 %v103
    %v167 = vunpack.c.l.b16 %v104
    %v168 = vunpack.c.l.b16 %v105
    %v169 = vunpack.c.l.b16 %v106
    %v170 = vunpack.c.l.b16 %v107
    %v171 = vunpack.c.l.b16 %v108
    %v172 = vunpack.c.l.b16 %v109
    %v173 = vunpack.c.l.b16 %v110
    %v174 = vunpack.c.l.b16 %v111
    %v175 = vunpack.c.l.b16 %v112
    %v176 = vunpack.c.l.b16 %v113
    %v177 = vunpack.c.l.b16 %v114
    %v178 = vpack.c.b16 %v163, %v162
    %v179 = vpack.c.b16 %v165, %v164
    %v180 = vpack.c.b16 %v167, %v166
    %v181 = vpack.c.b16 %v169, %v168
    %v182 = vpack.c.b16 %v171, %v170
    %v183 = vpack.c.b16 %v173, %v172
    %v184 = vpack.c.b16 %v175, %v174
    %v185 = vpack.c.b16 %v177, %v176
    %194 = vmatprep.subr.bf16.mxu0 0
    %195 = vmatpush1.bf16.msra.mxu0 %v178
    %196 = vmatprep.subr.bf16.mxu0 0
    %197 = vmatpush1.bf16.msra.mxu0 %v179
    %198 = vmatprep.subr.bf16.mxu0 0
    %199 = vmatpush1.bf16.msra.mxu0 %v180
    %200 = vmatprep.subr.bf16.mxu0 0
    %201 = vmatpush1.bf16.msra.mxu0 %v181
    %202 = vmatprep.subr.bf16.mxu0 0
    %203 = vmatpush1.bf16.msra.mxu0 %v182
    %204 = vmatprep.subr.bf16.mxu0 0
    %205 = vmatpush1.bf16.msra.mxu0 %v183
    %206 = vmatprep.subr.bf16.mxu0 0
    %207 = vmatpush1.bf16.msra.mxu0 %v184
    %208 = vmatprep.subr.bf16.mxu0 0
    %209 = vmatpush1.bf16.msra.mxu0 %v185
    %210 = vmatprep.subr.bf16.mxu0 0
    %211 = vmatpush1.bf16.msra.mxu0 0
    %212 = vmatprep.subr.bf16.mxu0 0
    %213 = vmatpush1.bf16.msra.mxu0 0
    %214 = vmatprep.subr.bf16.mxu0 0
    %215 = vmatpush1.bf16.msra.mxu0 0
    %216 = vmatprep.subr.bf16.mxu0 0
    %217 = vmatpush1.bf16.msra.mxu0 0
    %218 = vmatprep.subr.bf16.mxu0 0
    %219 = vmatpush1.bf16.msra.mxu0 0
    %220 = vmatprep.subr.bf16.mxu0 0
    %221 = vmatpush1.bf16.msra.mxu0 0
    %222 = vmatprep.subr.bf16.mxu0 0
    %223 = vmatpush1.bf16.msra.mxu0 0
    %224 = vmatprep.subr.bf16.mxu0 0
    %225 = vmatpush1.bf16.msra.mxu0 0
    %226 = vmatprep.mubr.bf16.mxu0 0
    %227 = vmatmul.mubr.bf16.gmra.mrb[0].mxu0 %v138
    %v228 = vpop.f32.mrb[0].mxu0
    %v229 = vadd.f32 %v120, %v228
    %v230 = vpop.f32.mrb[0].mxu0
    %v231 = vpop.f32.mrb[0].mxu0
    %v232 = vadd.f32 %v120, %v231
    %v233 = vpop.f32.mrb[0].mxu0
    %234 = vmatprep.mubr.bf16.mxu0 0
    %235 = vmatmul.mubr.bf16.gmra.mrb[0].mxu0 %v139
    %v236 = vpop.f32.mrb[0].mxu0
    %v237 = vadd.f32 %v120, %v236
    %v238 = vpop.f32.mrb[0].mxu0
    %v239 = vpop.f32.mrb[0].mxu0
    %v240 = vadd.f32 %v120, %v239
    %v241 = vpop.f32.mrb[0].mxu0
    %242 = vmatprep.mubr.bf16.mxu0 0
    %243 = vmatmul.mubr.bf16.gmra.mrb[0].mxu0 %v140
    %v244 = vpop.f32.mrb[0].mxu0
    %v245 = vadd.f32 %v120, %v244
    %v246 = vpop.f32.mrb[0].mxu0
    %v247 = vpop.f32.mrb[0].mxu0
    %v248 = vadd.f32 %v120, %v247
    %v249 = vpop.f32.mrb[0].mxu0
    %250 = vmatprep.mubr.bf16.mxu0 0
    %251 = vmatmul.mubr.bf16.gmra.mrb[0].mxu0 %v141
    %v252 = vpop.f32.mrb[0].mxu0
    %v253 = vadd.f32 %v120, %v252
    %v254 = vpop.f32.mrb[0].mxu0
    %v255 = vpop.f32.mrb[0].mxu0
    %v256 = vadd.f32 %v120, %v255
    %v257 = vpop.f32.mrb[0].mxu0
    %258 = vdwg.mxu0
    %v259 = vmul.f32 %v229, 0.01
    %v260 = vmul.f32 %v232, 0.01
    %v261 = vmul.f32 %v237, 0.01
    %v262 = vmul.f32 %v240, 0.01
    %v263 = vmul.f32 %v245, 0.01
    %v264 = vmul.f32 %v248, 0.01
    %v265 = vmul.f32 %v253, 0.01
    %v266 = vmul.f32 %v256, 0.01
    %v267 = vmax.f32 %v229, %v259
    %v268 = vmax.f32 %v232, %v260
    %v269 = vmax.f32 %v237, %v261
    %v270 = vmax.f32 %v240, %v262
    %v271 = vmax.f32 %v245, %v263
    %v272 = vmax.f32 %v248, %v264
    %v273 = vmax.f32 %v253, %v265
    %v274 = vmax.f32 %v256, %v266
    %v275 = vpack.c.bf16 %v268, %v267
    %v276 = vpack.c.bf16 %v270, %v269
    %v277 = vpack.c.bf16 %v272, %v271
    %v278 = vpack.c.bf16 %v274, %v273
    %v279 = vld [vmem:[#allocation8] sm:$0xf]
    %v280 = vld [vmem:[#allocation8 + $0x4] sm:$0xf]
    %v281 = vld [vmem:[#allocation8 + $0x8] sm:$0xf]
    %v282 = vld [vmem:[#allocation8 + $0xc] sm:$0xf]
    %v283 = vld [vmem:[#allocation8 + $0x10] sm:$0xf]
    %v284 = vld [vmem:[#allocation8 + $0x14] sm:$0xf]
    %v285 = vld [vmem:[#allocation8 + $0x18] sm:$0xf]
    %v286 = vld [vmem:[#allocation8 + $0x1c] sm:$0xf]
    %v287 = vld [vmem:[#allocation8 + $0x20] sm:$0xf]
    %v288 = vld [vmem:[#allocation8 + $0x24] sm:$0xf]
    %v289 = vld [vmem:[#allocation8 + $0x28] sm:$0xf]
    %v290 = vld [vmem:[#allocation8 + $0x2c] sm:$0xf]
    %v291 = vld [vmem:[#allocation8 + $0x30] sm:$0xf]
    %v292 = vld [vmem:[#allocation8 + $0x34] sm:$0xf]
    %v293 = vld [vmem:[#allocation8 + $0x38] sm:$0xf]
    %v294 = vld [vmem:[#allocation8 + $0x3c] sm:$0xf]
    %v295 = vld [vmem:[%s4] sm:$0x1]
    %v297 = vlaneseq
    %v298 = vshrl.u32 %v297, 7
    %v299 = vsub.s32 0, %v298
    %v300 = vrot.slane %v295, %v299
    %v318 = vunpack.c.l.b16 %v279
    %v319 = vunpack.c.l.b16 %v280
    %v320 = vunpack.c.l.b16 %v281
    %v321 = vunpack.c.l.b16 %v282
    %v322 = vunpack.c.l.b16 %v283
    %v323 = vunpack.c.l.b16 %v284
    %v324 = vunpack.c.l.b16 %v285
    %v325 = vunpack.c.l.b16 %v286
    %v326 = vunpack.c.l.b16 %v287
    %v327 = vunpack.c.l.b16 %v288
    %v328 = vunpack.c.l.b16 %v289
    %v329 = vunpack.c.l.b16 %v290
    %v330 = vunpack.c.l.b16 %v291
    %v331 = vunpack.c.l.b16 %v292
    %v332 = vunpack.c.l.b16 %v293
    %v333 = vunpack.c.l.b16 %v294
    %v334 = vpack.c.b16 %v319, %v318
    %v335 = vpack.c.b16 %v321, %v320
    %v336 = vpack.c.b16 %v323, %v322
    %v337 = vpack.c.b16 %v325, %v324
    %v338 = vpack.c.b16 %v327, %v326
    %v339 = vpack.c.b16 %v329, %v328
    %v340 = vpack.c.b16 %v331, %v330
    %v341 = vpack.c.b16 %v333, %v332
    %350 = vmatprep.subr.bf16.mxu0 0
    %351 = vmatpush1.bf16.msra.mxu0 %v334
    %352 = vmatprep.subr.bf16.mxu0 0
    %353 = vmatpush1.bf16.msra.mxu0 %v335
    %354 = vmatprep.subr.bf16.mxu0 0
    %355 = vmatpush1.bf16.msra.mxu0 %v336
    %356 = vmatprep.subr.bf16.mxu0 0
    %357 = vmatpush1.bf16.msra.mxu0 %v337
    %358 = vmatprep.subr.bf16.mxu0 0
    %359 = vmatpush1.bf16.msra.mxu0 %v338
    %360 = vmatprep.subr.bf16.mxu0 0
    %361 = vmatpush1.bf16.msra.mxu0 %v339
    %362 = vmatprep.subr.bf16.mxu0 0
    %363 = vmatpush1.bf16.msra.mxu0 %v340
    %364 = vmatprep.subr.bf16.mxu0 0
    %365 = vmatpush1.bf16.msra.mxu0 %v341
    %366 = vmatprep.subr.bf16.mxu0 0
    %367 = vmatpush1.bf16.msra.mxu0 0
    %368 = vmatprep.subr.bf16.mxu0 0
    %369 = vmatpush1.bf16.msra.mxu0 0
    %370 = vmatprep.subr.bf16.mxu0 0
    %371 = vmatpush1.bf16.msra.mxu0 0
    %372 = vmatprep.subr.bf16.mxu0 0
    %373 = vmatpush1.bf16.msra.mxu0 0
    %374 = vmatprep.subr.bf16.mxu0 0
    %375 = vmatpush1.bf16.msra.mxu0 0
    %376 = vmatprep.subr.bf16.mxu0 0
    %377 = vmatpush1.bf16.msra.mxu0 0
    %378 = vmatprep.subr.bf16.mxu0 0
    %379 = vmatpush1.bf16.msra.mxu0 0
    %380 = vmatprep.subr.bf16.mxu0 0
    %381 = vmatpush1.bf16.msra.mxu0 0
    %382 = vmatprep.mubr.bf16.mxu0 0
    %383 = vmatmul.mubr.bf16.gmra.mrb[0].mxu0 %v275
    %v384 = vpop.f32.mrb[0].mxu0
    %v385 = vadd.f32 %v300, %v384
    %v386 = vpop.f32.mrb[0].mxu0
    %v387 = vpop.f32.mrb[0].mxu0
    %v388 = vadd.f32 %v300, %v387
    %v389 = vpop.f32.mrb[0].mxu0
    %390 = vmatprep.mubr.bf16.mxu0 0
    %391 = vmatmul.mubr.bf16.gmra.mrb[0].mxu0 %v276
    %v392 = vpop.f32.mrb[0].mxu0
    %v393 = vadd.f32 %v300, %v392
    %v394 = vpop.f32.mrb[0].mxu0
    %v395 = vpop.f32.mrb[0].mxu0
    %v396 = vadd.f32 %v300, %v395
    %v397 = vpop.f32.mrb[0].mxu0
    %398 = vmatprep.mubr.bf16.mxu0 0
    %399 = vmatmul.mubr.bf16.gmra.mrb[0].mxu0 %v277
    %v400 = vpop.f32.mrb[0].mxu0
    %v401 = vadd.f32 %v300, %v400
    %v402 = vpop.f32.mrb[0].mxu0
    %v403 = vpop.f32.mrb[0].mxu0
    %v404 = vadd.f32 %v300, %v403
    %v405 = vpop.f32.mrb[0].mxu0
    %406 = vmatprep.mubr.bf16.mxu0 0
    %407 = vmatmul.mubr.bf16.gmra.mrb[0].mxu0 %v278
    %v408 = vpop.f32.mrb[0].mxu0
    %v409 = vadd.f32 %v300, %v408
    %v410 = vpop.f32.mrb[0].mxu0
    %v411 = vpop.f32.mrb[0].mxu0
    %v412 = vadd.f32 %v300, %v411
    %v413 = vpop.f32.mrb[0].mxu0
    %414 = vdwg.mxu0
    %v415 = vmul.f32 %v385, 0.01
    %v416 = vmul.f32 %v388, 0.01
    %v417 = vmul.f32 %v393, 0.01
    %v418 = vmul.f32 %v396, 0.01
    %v419 = vmul.f32 %v401, 0.01
    %v420 = vmul.f32 %v404, 0.01
    %v421 = vmul.f32 %v409, 0.01
    %v422 = vmul.f32 %v412, 0.01
    %v423 = vmax.f32 %v385, %v415
    %v424 = vmax.f32 %v388, %v416
    %v425 = vmax.f32 %v393, %v417
    %v426 = vmax.f32 %v396, %v418
    %v427 = vmax.f32 %v401, %v419
    %v428 = vmax.f32 %v404, %v420
    %v429 = vmax.f32 %v409, %v421
    %v430 = vmax.f32 %v412, %v422
    %v431 = vpack.c.bf16 %v424, %v423
    %v432 = vpack.c.bf16 %v426, %v425
    %v433 = vpack.c.bf16 %v428, %v427
    %v434 = vpack.c.bf16 %v430, %v429
    %v435 = vld [vmem:[#allocation9] sm:$0xf]
    %v436 = vld [vmem:[#allocation9 + $0x4] sm:$0xf]
    %v437 = vld [vmem:[#allocation9 + $0x8] sm:$0xf]
    %v438 = vld [vmem:[#allocation9 + $0xc] sm:$0xf]
    %v439 = vld [vmem:[#allocation9 + $0x10] sm:$0xf]
    %v440 = vld [vmem:[#allocation9 + $0x14] sm:$0xf]
    %v441 = vld [vmem:[#allocation9 + $0x18] sm:$0xf]
    %v442 = vld [vmem:[#allocation9 + $0x1c] sm:$0xf]
    %v443 = vld [vmem:[#allocation9 + $0x20] sm:$0xf]
    %v444 = vld [vmem:[#allocation9 + $0x24] sm:$0xf]
    %v445 = vld [vmem:[#allocation9 + $0x28] sm:$0xf]
    %v446 = vld [vmem:[#allocation9 + $0x2c] sm:$0xf]
    %v447 = vld [vmem:[#allocation9 + $0x30] sm:$0xf]
    %v448 = vld [vmem:[#allocation9 + $0x34] sm:$0xf]
    %v449 = vld [vmem:[#allocation9 + $0x38] sm:$0xf]
    %v450 = vld [vmem:[#allocation9 + $0x3c] sm:$0xf]
    %v451 = vld [vmem:[%s6] sm:$0x1]
    %v453 = vlaneseq
    %v454 = vshrl.u32 %v453, 7
    %v455 = vsub.s32 0, %v454
    %v456 = vrot.slane %v451, %v455
    %v474 = vunpack.c.l.b16 %v435
    %v475 = vunpack.c.l.b16 %v436
    %v476 = vunpack.c.l.b16 %v437
    %v477 = vunpack.c.l.b16 %v438
    %v478 = vunpack.c.l.b16 %v439
    %v479 = vunpack.c.l.b16 %v440
    %v480 = vunpack.c.l.b16 %v441
    %v481 = vunpack.c.l.b16 %v442
    %v482 = vunpack.c.l.b16 %v443
    %v483 = vunpack.c.l.b16 %v444
    %v484 = vunpack.c.l.b16 %v445
    %v485 = vunpack.c.l.b16 %v446
    %v486 = vunpack.c.l.b16 %v447
    %v487 = vunpack.c.l.b16 %v448
    %v488 = vunpack.c.l.b16 %v449
    %v489 = vunpack.c.l.b16 %v450
    %v490 = vpack.c.b16 %v475, %v474
    %v491 = vpack.c.b16 %v477, %v476
    %v492 = vpack.c.b16 %v479, %v478
    %v493 = vpack.c.b16 %v481, %v480
    %v494 = vpack.c.b16 %v483, %v482
    %v495 = vpack.c.b16 %v485, %v484
    %v496 = vpack.c.b16 %v487, %v486
    %v497 = vpack.c.b16 %v489, %v488
    %506 = vmatprep.subr.bf16.mxu0 0
    %507 = vmatpush1.bf16.msra.mxu0 %v490
    %508 = vmatprep.subr.bf16.mxu0 0
    %509 = vmatpush1.bf16.msra.mxu0 %v491
    %510 = vmatprep.subr.bf16.mxu0 0
    %511 = vmatpush1.bf16.msra.mxu0 %v492
    %512 = vmatprep.subr.bf16.mxu0 0
    %513 = vmatpush1.bf16.msra.mxu0 %v493
    %514 = vmatprep.subr.bf16.mxu0 0
    %515 = vmatpush1.bf16.msra.mxu0 %v494
    %516 = vmatprep.subr.bf16.mxu0 0
    %517 = vmatpush1.bf16.msra.mxu0 %v495
    %518 = vmatprep.subr.bf16.mxu0 0
    %519 = vmatpush1.bf16.msra.mxu0 %v496
    %520 = vmatprep.subr.bf16.mxu0 0
    %521 = vmatpush1.bf16.msra.mxu0 %v497
    %522 = vmatprep.subr.bf16.mxu0 0
    %523 = vmatpush1.bf16.msra.mxu0 0
    %524 = vmatprep.subr.bf16.mxu0 0
    %525 = vmatpush1.bf16.msra.mxu0 0
    %526 = vmatprep.subr.bf16.mxu0 0
    %527 = vmatpush1.bf16.msra.mxu0 0
    %528 = vmatprep.subr.bf16.mxu0 0
    %529 = vmatpush1.bf16.msra.mxu0 0
    %530 = vmatprep.subr.bf16.mxu0 0
    %531 = vmatpush1.bf16.msra.mxu0 0
    %532 = vmatprep.subr.bf16.mxu0 0
    %533 = vmatpush1.bf16.msra.mxu0 0
    %534 = vmatprep.subr.bf16.mxu0 0
    %535 = vmatpush1.bf16.msra.mxu0 0
    %536 = vmatprep.subr.bf16.mxu0 0
    %537 = vmatpush1.bf16.msra.mxu0 0
    %538 = vmatprep.mubr.bf16.mxu0 0
    %539 = vmatmul.mubr.bf16.gmra.mrb[0].mxu0 %v431
    %v540 = vpop.f32.mrb[0].mxu0
    %v541 = vadd.f32 %v456, %v540
    %v542 = vpop.f32.mrb[0].mxu0
    %v543 = vpop.f32.mrb[0].mxu0
    %v544 = vadd.f32 %v456, %v543
    %v545 = vpop.f32.mrb[0].mxu0
    %546 = vmatprep.mubr.bf16.mxu0 0
    %547 = vmatmul.mubr.bf16.gmra.mrb[0].mxu0 %v432
    %v548 = vpop.f32.mrb[0].mxu0
    %v549 = vadd.f32 %v456, %v548
    %v550 = vpop.f32.mrb[0].mxu0
    %v551 = vpop.f32.mrb[0].mxu0
    %v552 = vadd.f32 %v456, %v551
    %v553 = vpop.f32.mrb[0].mxu0
    %554 = vmatprep.mubr.bf16.mxu0 0
    %555 = vmatmul.mubr.bf16.gmra.mrb[0].mxu0 %v433
    %v556 = vpop.f32.mrb[0].mxu0
    %v557 = vadd.f32 %v456, %v556
    %v558 = vpop.f32.mrb[0].mxu0
    %v559 = vpop.f32.mrb[0].mxu0
    %v560 = vadd.f32 %v456, %v559
    %v561 = vpop.f32.mrb[0].mxu0
    %562 = vmatprep.mubr.bf16.mxu0 0
    %563 = vmatmul.mubr.bf16.gmra.mrb[0].mxu0 %v434
    %v564 = vpop.f32.mrb[0].mxu0
    %v565 = vadd.f32 %v456, %v564
    %v566 = vpop.f32.mrb[0].mxu0
    %v567 = vpop.f32.mrb[0].mxu0
    %v568 = vadd.f32 %v456, %v567
    %v569 = vpop.f32.mrb[0].mxu0
    %570 = vdwg.mxu0
    %v571 = vmul.f32 %v541, 0.01
    %v572 = vmul.f32 %v544, 0.01
    %v573 = vmul.f32 %v549, 0.01
    %v574 = vmul.f32 %v552, 0.01
    %v575 = vmul.f32 %v557, 0.01
    %v576 = vmul.f32 %v560, 0.01
    %v577 = vmul.f32 %v565, 0.01
    %v578 = vmul.f32 %v568, 0.01
    %v579 = vmax.f32 %v541, %v571
    %v580 = vmax.f32 %v544, %v572
    %v581 = vmax.f32 %v549, %v573
    %v582 = vmax.f32 %v552, %v574
    %v583 = vmax.f32 %v557, %v575
    %v584 = vmax.f32 %v560, %v576
    %v585 = vmax.f32 %v565, %v577
    %v586 = vmax.f32 %v568, %v578
    %v587 = vpack.c.bf16 %v580, %v579
    %v588 = vpack.c.bf16 %v582, %v581
    %v589 = vpack.c.bf16 %v584, %v583
    %v590 = vpack.c.bf16 %v586, %v585
    %v591 = vld [vmem:[%s7] sm:$0xf]
    %592 = vmatprep.subr.bf16.mxu0 0
    %593 = vmatpush1.bf16.xpose.msra.mxu0 %v587
    %594 = vmatprep.subr.bf16.mxu0 0
    %595 = vmatpush1.bf16.xpose.msra.mxu0 %v588
    %596 = vmatprep.subr.bf16.mxu0 0
    %597 = vmatpush1.bf16.xpose.msra.mxu0 %v589
    %598 = vmatprep.subr.bf16.mxu0 0
    %599 = vmatpush1.bf16.xpose.msra.mxu0 %v590
    %600 = vmatprep.subr.bf16.mxu0 0
    %601 = vmatpush1.bf16.xpose.msra.mxu0 0
    %602 = vmatprep.subr.bf16.mxu0 0
    %603 = vmatpush1.bf16.xpose.msra.mxu0 0
    %604 = vmatprep.subr.bf16.mxu0 0
    %605 = vmatpush1.bf16.xpose.msra.mxu0 0
    %606 = vmatprep.subr.bf16.mxu0 0
    %607 = vmatpush1.bf16.xpose.msra.mxu0 0
    %608 = vmatprep.subr.bf16.mxu0 0
    %609 = vmatpush1.bf16.xpose.msra.mxu0 0
    %610 = vmatprep.subr.bf16.mxu0 0
    %611 = vmatpush1.bf16.xpose.msra.mxu0 0
    %612 = vmatprep.subr.bf16.mxu0 0
    %613 = vmatpush1.bf16.xpose.msra.mxu0 0
    %614 = vmatprep.subr.bf16.mxu0 0
    %615 = vmatpush1.bf16.xpose.msra.mxu0 0
    %616 = vmatprep.subr.bf16.mxu0 0
    %617 = vmatpush1.bf16.xpose.msra.mxu0 0
    %618 = vmatprep.subr.bf16.mxu0 0
    %619 = vmatpush1.bf16.xpose.msra.mxu0 0
    %620 = vmatprep.subr.bf16.mxu0 0
    %621 = vmatpush1.bf16.xpose.msra.mxu0 0
    %622 = vmatprep.subr.bf16.mxu0 0
    %623 = vmatpush1.bf16.xpose.msra.mxu0 0
    %624 = vmatprep.mubr.bf16.mxu0 0
    %625 = vmatmul.mubr.bf16.gmra.mrb[0].mxu0 %v591
    %v626 = vpop.f32.mrb[0].mxu0
    %v627 = vadd.f32 0.0, %v626
    %v628 = vpop.f32.mrb[0].mxu0
    %v629 = vpop.f32.mrb[0].mxu0
    %v630 = vpop.f32.mrb[0].mxu0
    %631 = vdwg.mxu0
    %v632 = vld [vmem:[#allocation2] sm:$0x1]
    %634 = vset.pattern.permute.xlu0 0
    %635 = vperm.xlu0 %634, %v632
    %v636 = vpop.permute.xlu0 %635
    %v638 = vlaneseq
    %v639 = vshrl.u32 %v638, 7
    %v640 = vsub.s32 0, %v639
    %v641 = vrot.slane %v636, %v640
    %v642 = vadd.f32 %v627, %v641
    %v643 = vxor.u32 %v642, 2147483648
    %v644 = vmul.f32 %v643, 1.442695
    %v645 = vpow.pop %v644
    %v646 = vadd.f32 %v645, 1.0
    %v647 = vrcp.pop %v646
    %v648 = vmul.f32 1.0, %v647
    %v649 = vmul.f32 %v648, 70.0
    %v650 = vadd.f32 %v649, 20.0
    %vm651 = vcmask 516096
    %652 = vst.msk [vmem:[#allocation11] sm:$0x1] %vm651, %v650
    // Predicated region
    $region54: #{tpu_custom_call.1} parent=1 // pred_check
      _
    $region55: #{tpu_custom_call.1} parent=1 // pred_check_branch
      %654 = sbr.rel (0) target = $region57
    $region56: #{tpu_custom_call.1} parent=1 // pred_region
      %s656 = ssub.s32 16, 16
      %657 = vsyncadd [#allocation5], %s656
      %s659 = sshll.u32 [#allocation11], 4
      %s660 = int_to_ptr.vmem [resolvable:$true] %s659
      %662 = dma.vmem_to_hbm [thread:$0]  %s660, 16, %s9, [#allocation5]
    $region57: #{tpu_custom_call.1} parent=1 // pred_fallthru
      _
    // Predicated region
    $region58: #{tpu_custom_call.1} parent=1 // pred_check
      _
    $region59: #{tpu_custom_call.1} parent=1 // pred_check_branch
      %664 = sbr.rel (0) target = $region61
    $region60: #{tpu_custom_call.1} parent=1 // pred_region
      %665 = dma.done [#allocation5], 16
    $region61: #{tpu_custom_call.1} parent=1 // pred_fallthru
      _
    %666 = vsyncpa [#allocation4], 1
    %667 = vsyncpa [#allocation7], 1
    %668 = vsyncpa [#allocation10], 1
    %669 = vsyncpa [#allocation5], 1

</llo_original>
